<compile_context>
chip_gen: v6e
topology: v6e:2x2x1
jax: 0.10.0
libtpu: 0.0.40
codegen_flags: <defaults>
</compile_context>

<pallas_src>
import jax
import jax.numpy as jnp
from jax.experimental import pallas as pl
from jax.experimental.pallas import tpu as pltpu


def linear_permute_kernel(x_ref, wb_ref, o_ref):
    # x_ref : SMEM (2, 3) f32 -- x1 in its ORIGINAL layout (batch squeezed).
    #         The permute(0, 2, 1) is realized by the scalar indexing below.
    # wb_ref: VMEM (3, 60) f32 -- packed once at init: row0 = W[:, 0],
    #         row1 = W[:, 1], row2 = bias.
    # o_ref : VMEM (3, 60) f32
    w0 = wb_ref[0:1, :]      # (1, 60) weight column for input channel 0
    w1 = wb_ref[1:2, :]      # (1, 60) weight column for input channel 1
    b = wb_ref[2:3, :]       # (1, 60) bias
    # Static unrolled loop over the 3 output rows (sequence positions).
    # out[j, :] = x[0, j] * W[:, 0] + x[1, j] * W[:, 1] + bias
    # Pure VPU scalar*vector broadcasts + adds; no MXU, no in-kernel transpose.
    for j in range(3):
        o_ref[j:j + 1, :] = x_ref[0, j] * w0 + x_ref[1, j] * w1 + b


def pack_params(weight, bias):
    """One-time parameter prep (init-time, NOT per forward).

    weight: (60, 2), bias: (60,) -> packed (3, 60): [W[:,0]; W[:,1]; bias].
    """
    return jnp.concatenate([jnp.transpose(weight), bias.reshape(1, -1)], axis=0)


@jax.jit
def model_forward(x1, wb_packed):
    """x1: (1, 2, 3) f32, wb_packed: (3, 60) f32 -> (1, 3, 60) f32."""
    x2d = x1.reshape(2, 3)   # squeeze the size-1 batch dim (free, contiguous)

    out2d = pl.pallas_call(
        linear_permute_kernel,
        out_shape=jax.ShapeDtypeStruct((3, 60), jnp.float32),
        in_specs=[
            pl.BlockSpec(memory_space=pltpu.SMEM),   # x as scalars
            pl.BlockSpec(memory_space=pltpu.VMEM),   # packed weight+bias
        ],
        out_specs=pl.BlockSpec(memory_space=pltpu.VMEM),
        cost_estimate=pl.CostEstimate(
            flops=720, transcendentals=0, bytes_accessed=1464),
    )(x2d, wb_packed)

    return out2d.reshape(1, 3, 60)


if __name__ == "__main__":
    key = jax.random.PRNGKey(0)
    kx, kw, kb = jax.random.split(key, 3)

    # Input (matches torch.randn(1, 2, 3))
    x1 = jax.random.normal(kx, (1, 2, 3), dtype=jnp.float32)

    # Deterministic nn.Linear(2, 60) parameters (torch-style uniform init bound)
    bound = 1.0 / jnp.sqrt(2.0)
    weight = jax.random.uniform(kw, (60, 2), minval=-bound, maxval=bound,
                                dtype=jnp.float32)
    bias = jax.random.uniform(kb, (60,), minval=-bound, maxval=bound,
                              dtype=jnp.float32)

    # One-time parameter packing (hoisted out of the forward path).
    wb_packed = jax.block_until_ready(pack_params(weight, bias))

    out = model_forward(x1, wb_packed)
    out = jax.block_until_ready(out)

    # Reference check in plain JAX
    ref = jnp.transpose(x1, (0, 2, 1)) @ weight.T + bias
    assert out.shape == (1, 3, 60)
    assert jnp.allclose(out, ref, atol=1e-5, rtol=1e-5)

    print("KERNEL_OK")
</pallas_src>

<mosaic_0001>
module attributes {stable_mosaic.version = 11 : i64} {
  func.func @linear_permute_kernel(%arg0: memref<2x3xf32, #tpu.memory_space<smem>>, %arg1: memref<3x60xf32, #tpu.memory_space<vmem>>, %arg2: memref<3x60xf32, #tpu.memory_space<vmem>>) attributes {dimension_semantics = [], scalar_prefetch = 0 : i64, scratch_operands = 0 : i64, tpu.core_type = #tpu.core_type<tc>} {
    %c0 = arith.constant 0 : index
    %c0_0 = arith.constant 0 : index
    %0 = vector.load %arg1[%c0, %c0_0] : memref<3x60xf32, #tpu.memory_space<vmem>>, vector<1x60xf32>
    %c1 = arith.constant 1 : index
    %c0_1 = arith.constant 0 : index
    %1 = vector.load %arg1[%c1, %c0_1] : memref<3x60xf32, #tpu.memory_space<vmem>>, vector<1x60xf32>
    %c2 = arith.constant 2 : index
    %c0_2 = arith.constant 0 : index
    %2 = vector.load %arg1[%c2, %c0_2] : memref<3x60xf32, #tpu.memory_space<vmem>>, vector<1x60xf32>
    %c0_3 = arith.constant 0 : index
    %c0_4 = arith.constant 0 : index
    %3 = memref.load %arg0[%c0_3, %c0_4] : memref<2x3xf32, #tpu.memory_space<smem>>
    %4 = vector.broadcast %3 : f32 to vector<1x60xf32>
    %5 = arith.mulf %4, %0 : vector<1x60xf32>
    %c1_5 = arith.constant 1 : index
    %c0_6 = arith.constant 0 : index
    %6 = memref.load %arg0[%c1_5, %c0_6] : memref<2x3xf32, #tpu.memory_space<smem>>
    %7 = vector.broadcast %6 : f32 to vector<1x60xf32>
    %8 = arith.mulf %7, %1 : vector<1x60xf32>
    %9 = arith.addf %5, %8 : vector<1x60xf32>
    %10 = arith.addf %9, %2 : vector<1x60xf32>
    %c0_7 = arith.constant 0 : index
    %c0_8 = arith.constant 0 : index
    %11 = vector.load %arg2[%c0_7, %c0_8] : memref<3x60xf32, #tpu.memory_space<vmem>>, vector<1x60xf32>
    tpu.vector_store %arg2[%c0_7, %c0_8], %10 {strides = array<i32>} : memref<3x60xf32, #tpu.memory_space<vmem>>, vector<1x60xf32>,
    %c0_9 = arith.constant 0 : index
    %c1_10 = arith.constant 1 : index
    %12 = memref.load %arg0[%c0_9, %c1_10] : memref<2x3xf32, #tpu.memory_space<smem>>
    %13 = vector.broadcast %12 : f32 to vector<1x60xf32>
    %14 = arith.mulf %13, %0 : vector<1x60xf32>
    %c1_11 = arith.constant 1 : index
    %c1_12 = arith.constant 1 : index
    %15 = memref.load %arg0[%c1_11, %c1_12] : memref<2x3xf32, #tpu.memory_space<smem>>
    %16 = vector.broadcast %15 : f32 to vector<1x60xf32>
    %17 = arith.mulf %16, %1 : vector<1x60xf32>
    %18 = arith.addf %14, %17 : vector<1x60xf32>
    %19 = arith.addf %18, %2 : vector<1x60xf32>
    %c1_13 = arith.constant 1 : index
    %c0_14 = arith.constant 0 : index
    %20 = vector.load %arg2[%c1_13, %c0_14] : memref<3x60xf32, #tpu.memory_space<vmem>>, vector<1x60xf32>
    tpu.vector_store %arg2[%c1_13, %c0_14], %19 {strides = array<i32>} : memref<3x60xf32, #tpu.memory_space<vmem>>, vector<1x60xf32>,
    %c0_15 = arith.constant 0 : index
    %c2_16 = arith.constant 2 : index
    %21 = memref.load %arg0[%c0_15, %c2_16] : memref<2x3xf32, #tpu.memory_space<smem>>
    %22 = vector.broadcast %21 : f32 to vector<1x60xf32>
    %23 = arith.mulf %22, %0 : vector<1x60xf32>
    %c1_17 = arith.constant 1 : index
    %c2_18 = arith.constant 2 : index
    %24 = memref.load %arg0[%c1_17, %c2_18] : memref<2x3xf32, #tpu.memory_space<smem>>
    %25 = vector.broadcast %24 : f32 to vector<1x60xf32>
    %26 = arith.mulf %25, %1 : vector<1x60xf32>
    %27 = arith.addf %23, %26 : vector<1x60xf32>
    %28 = arith.addf %27, %2 : vector<1x60xf32>
    %c2_19 = arith.constant 2 : index
    %c0_20 = arith.constant 0 : index
    %29 = vector.load %arg2[%c2_19, %c0_20] : memref<3x60xf32, #tpu.memory_space<vmem>>, vector<1x60xf32>
    tpu.vector_store %arg2[%c2_19, %c0_20], %28 {strides = array<i32>} : memref<3x60xf32, #tpu.memory_space<vmem>>, vector<1x60xf32>,
    return
  }
}

</mosaic_0001>

<llo_original>
// kernel: model_forward.1
$region0: #{model_forward.1}
  #allocation0 [shape = 'u32[]', space=smem, size = 0x4, offset = 0x4, fixed_abs, tag = 'smem constant byte address 0x4 - core index']
  #allocation1 [shape = 'u32[144,128]{1,0:T(1,128)}', space=vmem, size = 0x12000, scoped, tag = 'internal scratch']
  %s0 = inlined_call_operand.hbm [shape: f32[2,3], index: 0, kind: input, shape index: {}]
  %s1 = inlined_call_operand.hbm [shape: f32[3,60], index: 1, kind: input, shape index: {}]
  %s2 = inlined_call_operand.vmem [shape: f32[3,60], index: 2, kind: output, shape index: {}]
  %s3 = sld [smem:[#allocation0]]
  $region26: #{model_forward.1} parent=0
    _
  %s5 = ssub.s32 1, %s3
  %s6 = scalar_select 0, %s5, %s3
  $region1: #{model_forward.1} parent=0
    #allocation2 [shape = 'u8[1024]{0}', space=smem, size = 0x400, scoped, tag = 'input window, operand 0, single buffered']
    #allocation3 [shape = 's32[1]{0}', space=sflag, size = 0x4, scoped, tag = 'scoped memory for model_forward.1']
    #allocation4 [shape = 's32[1]{0}', space=sflag, size = 0x4, scoped, tag = 'scoped memory for model_forward.1']
    #allocation5 [shape = 'u8[2048]{0}', space=vmem, size = 0x800, scoped, tag = 'input window, operand 1, single buffered']
    %7 = vsyncpa [#allocation4], 0
    %8 = vsyncpa [#allocation3], 0
    // Predicated region
    $region2: #{model_forward.1} parent=1 // pred_check
      _
    $region3: #{model_forward.1} parent=1 // pred_check_branch
      %10 = sbr.rel (0) target = $region5
    $region4: #{model_forward.1} parent=1 // pred_region
      %s12 = ssub.s32 32, 32
      %13 = vsyncadd [#allocation4], %s12
      %16 = dma.hbm_to_smem %s0, 32, [#allocation2], [#allocation4]
    $region5: #{model_forward.1} parent=1 // pred_fallthru
      _
    // Predicated region
    $region6: #{model_forward.1} parent=1 // pred_check
      _
    $region7: #{model_forward.1} parent=1 // pred_check_branch
      %18 = sbr.rel (0) target = $region9
    $region8: #{model_forward.1} parent=1 // pred_region
      %s20 = ssub.s32 64, 64
      %21 = vsyncadd [#allocation3], %s20
      %s23 = sshll.u32 [#allocation5], 4
      %s24 = int_to_ptr.vmem [resolvable:$true] %s23
      %26 = dma.hbm_to_vmem [thread:$0]  %s1, 64, %s24, [#allocation3]
    $region9: #{model_forward.1} parent=1 // pred_fallthru
      _
    // Predicated region
    $region10: #{model_forward.1} parent=1 // pred_check
      _
    $region11: #{model_forward.1} parent=1 // pred_check_branch
      %28 = sbr.rel (0) target = $region13
    $region12: #{model_forward.1} parent=1 // pred_region
      %29 = dma.done [#allocation4], 32
    $region13: #{model_forward.1} parent=1 // pred_fallthru
      _
    // Predicated region
    $region14: #{model_forward.1} parent=1 // pred_check
      _
    $region15: #{model_forward.1} parent=1 // pred_check_branch
      %31 = sbr.rel (0) target = $region17
    $region16: #{model_forward.1} parent=1 // pred_region
      %32 = dma.done [#allocation3], 64
    $region17: #{model_forward.1} parent=1 // pred_fallthru
      _
    %33 = sfence
    %v34 = vld [vmem:[#allocation5] sm:$0x1]
    %v35 = vld [vmem:[#allocation5 + $0x1] sm:$0x1]
    %v36 = vld [vmem:[#allocation5 + $0x2] sm:$0x1]
    %s37 = sld [smem:[#allocation2]]
    %v38 = vstv %s37
    %v39 = vmul.f32 %v38, %v34
    %s40 = sld [smem:[#allocation2 + $0x80]]
    %v41 = vstv %s40
    %v42 = vmul.f32 %v41, %v35
    %v43 = vadd.f32 %v39, %v42
    %v44 = vadd.f32 %v43, %v36
    %vm45 = vcmask 483328
    %46 = vst.msk [vmem:[%s2] sm:$0x1] %vm45, %v44
    %s47 = sld [smem:[#allocation2 + $0x1]]
    %v48 = vstv %s47
    %v49 = vmul.f32 %v48, %v34
    %s50 = sld [smem:[#allocation2 + $0x81]]
    %v51 = vstv %s50
    %v52 = vmul.f32 %v51, %v35
    %v53 = vadd.f32 %v49, %v52
    %v54 = vadd.f32 %v53, %v36
    %55 = vst.msk [vmem:[%s2 + $0x1] sm:$0x1] %vm45, %v54
    %s56 = sld [smem:[#allocation2 + $0x2]]
    %v57 = vstv %s56
    %v58 = vmul.f32 %v57, %v34
    %s59 = sld [smem:[#allocation2 + $0x82]]
    %v60 = vstv %s59
    %v61 = vmul.f32 %v60, %v35
    %v62 = vadd.f32 %v58, %v61
    %v63 = vadd.f32 %v62, %v36
    %64 = vst.msk [vmem:[%s2 + $0x2] sm:$0x1] %vm45, %v63
    // Predicated region
    $region18: #{model_forward.1} parent=1 // pred_check
      _
    $region19: #{model_forward.1} parent=1 // pred_check_branch
      %66 = sbr.rel (0) target = $region21
    $region20: #{model_forward.1} parent=1 // pred_region
      _
    $region21: #{model_forward.1} parent=1 // pred_fallthru
      _
    // Predicated region
    $region22: #{model_forward.1} parent=1 // pred_check
      _
    $region23: #{model_forward.1} parent=1 // pred_check_branch
      %68 = sbr.rel (0) target = $region25
    $region24: #{model_forward.1} parent=1 // pred_region
      _
    $region25: #{model_forward.1} parent=1 // pred_fallthru
      _
    %69 = vsyncpa [#allocation3], 1
    %70 = vsyncpa [#allocation4], 1

</llo_original>
